<compile_context>
chip_gen: v6e
topology: v6e:2x2x1
jax: 0.10.0
libtpu: 0.0.40
codegen_flags: <defaults>
</compile_context>

<pallas_src>
import numpy as np
import jax
import jax.numpy as jnp
from jax import lax
from jax.experimental import pallas as pl
from jax.experimental.pallas import tpu as pltpu

# ----------------------------- synthetic config ------------------------------
B = 2                         # batch
C_IN, H_IN, W_IN = 3, 16, 16
VIS_DIM = 32                  # clip_model.visual.output_dim (== joint embed dim)
CTX_DIM = 32                  # text width
EMBED_DIM = 32                # text_projection output dim
META_HIDDEN = max(VIS_DIM // 16, 1)   # meta_net hidden = 2
N_CLS = 4
N_LEARNERS = 2
EFF_LEN = 16                  # EFFICIENT_CONTEXT_LENGTH
VOCAB = 64
SOS_ID, X_ID, PERIOD_ID = 1, 3, 5
EOS_ID = VOCAB - 1            # largest id so argmax(-1) finds the EOT position
NAME_LEN = 1
CTX_CONFIG = ((2, 1), (3, 2))  # (n_ctx_beforename, n_ctx_aftername) per learner
LOGIT_PAD = 128               # lane-dense output width (sliced in wrapper)
OUT_ROWS = 8                  # sublane-dense output height (sliced in wrapper)
LN_EPS = 1e-5
L2_EPS = 1e-12

HI = jax.lax.Precision.HIGHEST

# ------------------------- packed-parameter layout ----------------------------
KMH = N_LEARNERS * META_HIDDEN          # 4
NKC = B * N_LEARNERS * N_CLS            # 16
PACK_LANES = 128
PK_BIMG = 0                              # [0,            0:VIS_DIM]   image bias
PK_B1   = 1                              # [1,            0:KMH]       meta layer-1 bias (stacked)
PK_LNG  = 2                              # [2,            0:CTX_DIM]   final LN gamma
PK_LNB  = 3                              # [3,            0:CTX_DIM]   final LN beta
PK_W2   = 4                              # [4:4+KMH,      0:CTX_DIM]   meta layer-2 weights (stacked)
PK_W1   = PK_W2 + KMH                    # [8:8+VIS_DIM,  0:KMH]       meta layer-1 weights (stacked)
PK_PROJ = PK_W1 + VIS_DIM                # [40:40+CTX_DIM,0:EMBED_DIM] text projection
PK_STAT = PK_PROJ + CTX_DIM              # [72:72+NKC,    0:CTX_DIM]   static EOT features
#                                          [72:72+NKC, CTX_DIM:CTX_DIM+1] ctx-slot coefficient c
PACK_ROWS = ((PK_STAT + NKC + 7) // 8) * 8   # 88 rows, (8,128)-aligned


# ------------------------------ fused Pallas kernel ---------------------------
def _fused_forward_kernel(x_ref, wimg_ref, pack_ref, scale_ref, o_ref):
    # ---- static slices of the packed parameter block -------------------------
    b_img  = pack_ref[PK_BIMG:PK_BIMG + 1, 0:VIS_DIM]
    b1     = pack_ref[PK_B1:PK_B1 + 1, 0:KMH]
    ln_g   = pack_ref[PK_LNG:PK_LNG + 1, 0:CTX_DIM]
    ln_b   = pack_ref[PK_LNB:PK_LNB + 1, 0:CTX_DIM]
    w2     = pack_ref[PK_W2:PK_W2 + KMH, 0:CTX_DIM]
    w1     = pack_ref[PK_W1:PK_W1 + VIS_DIM, 0:KMH]
    proj   = pack_ref[PK_PROJ:PK_PROJ + CTX_DIM, 0:EMBED_DIM]
    static = pack_ref[PK_STAT:PK_STAT + NKC, 0:CTX_DIM]            # (NKC, D)
    c_coef = pack_ref[PK_STAT:PK_STAT + NKC, CTX_DIM:CTX_DIM + 1]  # (NKC, 1)

    # ---- image encoder stand-in (bf16 MXU, f32 acc) + L2 normalize -----------
    feat = jnp.dot(x_ref[...], wimg_ref[...],
                   preferred_element_type=jnp.float32) + b_img
    imf = feat * lax.rsqrt(jnp.sum(feat * feat, axis=-1, keepdims=True) + L2_EPS)  # (B, E)

    # ---- both learners' meta_nets, layer 1: one stacked matmul ---------------
    h = jnp.maximum(jnp.dot(imf, w1, preferred_element_type=jnp.float32) + b1, 0.0)  # (B, KMH)

    # ---- layer 2 (depth META_HIDDEN=2): explicit FMA on the VPU --------------
    # rows ordered (batch-major, learner, class) to match the reference layout
    pieces = []
    for b in range(B):
        for k in range(N_LEARNERS):
            bias_bk = None
            for m in range(META_HIDDEN):
                r = k * META_HIDDEN + m
                term = h[b:b + 1, r:r + 1] * w2[r:r + 1, :]         # (1, D)
                bias_bk = term if bias_bk is None else bias_bk + term
            pieces.append(jnp.broadcast_to(bias_bk, (N_CLS, CTX_DIM)))
    bias_rep = jnp.concatenate(pieces, axis=0)                      # (NKC, D)

    # ---- pooled EOT features for all (batch, learner, class) rows at once ----
    # (the static part already folds prompt embeddings, pos-emb, token mixing
    #  row, EOT gather and the meta layer-2 bias term c*b2)
    pooled = static + c_coef * bias_rep                             # (NKC, D)

    # ---- text-encoder tail: LayerNorm + projection + L2, one fused pass ------
    mu = jnp.mean(pooled, axis=-1, keepdims=True)
    var = jnp.mean((pooled - mu) ** 2, axis=-1, keepdims=True)
    hk = (pooled - mu) * lax.rsqrt(var + LN_EPS) * ln_g + ln_b
    tf = jnp.dot(hk, proj, preferred_element_type=jnp.float32)      # (NKC, E)
    tf = tf * lax.rsqrt(jnp.sum(tf * tf, axis=-1, keepdims=True) + L2_EPS)

    # ---- ensemble mean over learners, re-normalize, cosine vs. image ---------
    tfm_parts = []
    for b in range(B):
        o = b * N_LEARNERS * N_CLS
        acc = tf[o:o + N_CLS, :]
        for k in range(1, N_LEARNERS):
            acc = acc + tf[o + k * N_CLS:o + (k + 1) * N_CLS, :]
        tfm_parts.append(acc)
    tfm = jnp.concatenate(tfm_parts, axis=0) * (1.0 / N_LEARNERS)   # (B*N_CLS, E)
    tfm = tfm * lax.rsqrt(jnp.sum(tfm * tfm, axis=-1, keepdims=True) + L2_EPS)

    scale = scale_ref[0]                                            # exp(logit_scale)
    cos_parts = []
    for b in range(B):
        cos_parts.append(lax.dot_general(
            imf[b:b + 1, :], tfm[b * N_CLS:(b + 1) * N_CLS, :],
            (((1,), (1,)), ((), ())), preferred_element_type=jnp.float32))  # (1, N_CLS)
    logits = scale * jnp.concatenate(cos_parts, axis=0)             # (B, N_CLS)

    # ---- lane/sublane-dense output slab ---------------------------------------
    o_ref[...] = jnp.zeros((OUT_ROWS, LOGIT_PAD), jnp.float32)
    o_ref[0:B, 0:N_CLS] = logits


# ------------------------- params / tokenized prompts -------------------------
def build_params(key):
    ks = jax.random.split(key, 8)
    p = {}
    p["w_img"] = jax.random.normal(ks[0], (C_IN * H_IN * W_IN, VIS_DIM), jnp.float32) / np.sqrt(C_IN * H_IN * W_IN)
    p["b_img"] = jax.random.normal(ks[1], (1, VIS_DIM), jnp.float32) * 0.01
    p["token_embedding"] = jax.random.normal(ks[2], (VOCAB, CTX_DIM), jnp.float32) * 0.02
    p["pos_emb"] = jax.random.normal(ks[3], (EFF_LEN, CTX_DIM), jnp.float32) * 0.01
    p["w_tok"] = jax.random.normal(ks[4], (EFF_LEN, EFF_LEN), jnp.float32) / EFF_LEN  # transformer stand-in mixer
    p["ln_g"] = jnp.ones((1, CTX_DIM), jnp.float32)
    p["ln_b"] = jnp.zeros((1, CTX_DIM), jnp.float32)
    p["text_proj"] = jax.random.normal(ks[5], (CTX_DIM, EMBED_DIM), jnp.float32) / np.sqrt(CTX_DIM)
    p["logit_scale"] = jnp.array([np.log(1.0 / 0.07)], jnp.float32)
    p["learners"] = []
    for li, (nb, na) in enumerate(CTX_CONFIG):
        kk = jax.random.split(ks[6 + li], 6)
        p["learners"].append({
            "ctx_before": jax.random.normal(kk[0], (nb, CTX_DIM), jnp.float32) * 0.02,
            "ctx_after": jax.random.normal(kk[1], (na, CTX_DIM), jnp.float32) * 0.02,
            "meta_w1": jax.random.normal(kk[2], (VIS_DIM, META_HIDDEN), jnp.float32) / np.sqrt(VIS_DIM),
            "meta_b1": jax.random.normal(kk[3], (1, META_HIDDEN), jnp.float32) * 0.01,
            "meta_w2": jax.random.normal(kk[4], (META_HIDDEN, CTX_DIM), jnp.float32) / np.sqrt(META_HIDDEN),
            "meta_b2": jax.random.normal(kk[5], (1, CTX_DIM), jnp.float32) * 0.01,
        })
    return p


def build_tokenized_prompts():
    # tokenized_prompts per learner: [SOS, X*nb, <cls>, X*na, '.', EOS, pad...]
    toks = np.zeros((N_LEARNERS, N_CLS, EFF_LEN), np.int32)
    for li, (nb, na) in enumerate(CTX_CONFIG):
        for c in range(N_CLS):
            seq = [SOS_ID] + [X_ID] * nb + [10 + c] * NAME_LEN + [X_ID] * na + [PERIOD_ID, EOS_ID]
            toks[li, c, : len(seq)] = seq
    eot = toks.argmax(axis=-1)                 # EOT position per prompt (compile-time constant)
    return toks, eot


def build_packed_params(params, toks_np, eot_np):
    """Single (8,128)-aligned f32 parameter pack.

    All image-independent prompt statics (base prompt embeddings with learned
    ctx, pos-emb, the static EOT mixing row of (I + W_tok), the ctx-slot
    coefficient c, and the folded c*meta_b2 term) are computed here at trace
    time -- exactly like the original module's registered prompt buffers.
    """
    tok_emb, w_tok, pos = params["token_embedding"], params["w_tok"], params["pos_emb"]
    static_list, c_list = [], []
    for li, (nb, na) in enumerate(CTX_CONFIG):
        lp = params["learners"][li]
        base = tok_emb[jnp.asarray(toks_np[li])]                              # (N_CLS, L, D)
        base = base.at[:, 1:1 + nb, :].set(
            jnp.broadcast_to(lp["ctx_before"][None], (N_CLS, nb, CTX_DIM)))
        sa = 1 + nb + NAME_LEN
        base = base.at[:, sa:sa + na, :].set(
            jnp.broadcast_to(lp["ctx_after"][None], (N_CLS, na, CTX_DIM)))

        mask = np.zeros((N_CLS, EFF_LEN), np.float32)
        mask[:, 1:1 + nb] = 1.0
        mask[:, sa:sa + na] = 1.0

        onehot = np.zeros((N_CLS, EFF_LEN), np.float32)
        onehot[np.arange(N_CLS), eot_np[li]] = 1.0
        # Row `eot` of (I + W_tok): one residual token-mixing layer, gathered statically.
        mix = jnp.asarray(onehot) + w_tok[jnp.asarray(eot_np[li]), :]         # (N_CLS, L)

        static = jnp.einsum("cl,cld->cd", mix, base + pos[None], precision=HI)  # (N_CLS, D)
        c_coef = jnp.sum(mix * jnp.asarray(mask), axis=1, keepdims=True)          # (N_CLS, 1)
        static = static + c_coef * lp["meta_b2"]          # fold meta layer-2 bias term
        static_list.append(static)
        c_list.append(c_coef)

    static_kc = jnp.concatenate(static_list, axis=0)      # (K*N_CLS, D), learner-major
    c_kc = jnp.concatenate(c_list, axis=0)                # (K*N_CLS, 1)
    static_flat = jnp.tile(static_kc, (B, 1))             # (NKC, D), batch-major
    c_flat = jnp.tile(c_kc, (B, 1))                       # (NKC, 1)

    lrn = params["learners"]
    w1_all = jnp.concatenate([l["meta_w1"] for l in lrn], axis=1)   # (VIS, KMH)
    b1_all = jnp.concatenate([l["meta_b1"] for l in lrn], axis=1)   # (1, KMH)
    w2_flat = jnp.concatenate([l["meta_w2"] for l in lrn], axis=0)  # (KMH, D)

    pack = jnp.zeros((PACK_ROWS, PACK_LANES), jnp.float32)
    pack = pack.at[PK_BIMG, 0:VIS_DIM].set(params["b_img"][0])
    pack = pack.at[PK_B1, 0:KMH].set(b1_all[0])
    pack = pack.at[PK_LNG, 0:CTX_DIM].set(params["ln_g"][0])
    pack = pack.at[PK_LNB, 0:CTX_DIM].set(params["ln_b"][0])
    pack = pack.at[PK_W2:PK_W2 + KMH, 0:CTX_DIM].set(w2_flat)
    pack = pack.at[PK_W1:PK_W1 + VIS_DIM, 0:KMH].set(w1_all)
    pack = pack.at[PK_PROJ:PK_PROJ + CTX_DIM, 0:EMBED_DIM].set(params["text_proj"])
    pack = pack.at[PK_STAT:PK_STAT + NKC, 0:CTX_DIM].set(static_flat)
    pack = pack.at[PK_STAT:PK_STAT + NKC, CTX_DIM:CTX_DIM + 1].set(c_flat)
    return pack


# ------------------------------- Pallas forward --------------------------------
def forward_pallas(image, params, toks_np, eot_np):
    x_flat = image.reshape(image.shape[0], -1).astype(jnp.bfloat16)   # (B, C*H*W) bf16
    w_img = params["w_img"].astype(jnp.bfloat16)                      # bf16 MXU weights
    pack = build_packed_params(params, toks_np, eot_np)               # (88, 128) f32
    scale = jnp.exp(params["logit_scale"])                            # (1,) exp precomputed

    vmem = pl.BlockSpec(memory_space=pltpu.MemorySpace.VMEM)
    smem = pl.BlockSpec(memory_space=pltpu.MemorySpace.SMEM)
    out_padded = pl.pallas_call(
        _fused_forward_kernel,
        out_shape=jax.ShapeDtypeStruct((OUT_ROWS, LOGIT_PAD), jnp.float32),
        in_specs=[vmem, vmem, vmem, smem],
        out_specs=vmem,
    )(x_flat, w_img, pack, scale)
    return out_padded[:B, :N_CLS]


# -------------------------- pure-JAX reference forward -------------------------
def forward_ref(image, params, toks_np, eot_np):
    x_flat = image.reshape(image.shape[0], -1)
    # Same deliberate bf16 cast on the image matmul as the Pallas path.
    feat = jnp.dot(x_flat.astype(jnp.bfloat16), params["w_img"].astype(jnp.bfloat16),
                   preferred_element_type=jnp.float32) + params["b_img"]
    imf = feat * lax.rsqrt(jnp.sum(feat * feat, axis=-1, keepdims=True) + L2_EPS)

    prompts_list = []
    for li, (nb, na) in enumerate(CTX_CONFIG):
        lp = params["learners"][li]
        h = jnp.maximum(jnp.dot(imf, lp["meta_w1"], precision=HI) + lp["meta_b1"], 0.0)
        bias = jnp.einsum("bm,md->bd", h, lp["meta_w2"], precision=HI) + lp["meta_b2"]
        base = params["token_embedding"][jnp.asarray(toks_np[li])]         # (N_CLS, L, D)
        prompts = jnp.broadcast_to(base[None], (B, N_CLS, EFF_LEN, CTX_DIM))
        ctx_b = lp["ctx_before"][None] + bias[:, None, :]
        ctx_a = lp["ctx_after"][None] + bias[:, None, :]
        prompts = prompts.at[:, :, 1:1 + nb, :].set(ctx_b[:, None, :, :])
        sa = 1 + nb + NAME_LEN
        prompts = prompts.at[:, :, sa:sa + na, :].set(ctx_a[:, None, :, :])
        prompts_list.append(prompts)
    prompts = jnp.stack(prompts_list, axis=1).reshape(B, N_LEARNERS * N_CLS, EFF_LEN, CTX_DIM)

    # text encoder stand-in: pos-emb, one residual token-mixing layer, EOT gather, LN, proj
    x = prompts + params["pos_emb"][None, None]
    x = x + jnp.einsum("lm,bnmd->bnld", params["w_tok"], x, precision=HI)
    eot_flat = eot_np.reshape(-1)
    onehot = jnp.asarray((np.arange(EFF_LEN)[None, :] == eot_flat[:, None]).astype(np.float32))
    pooled = jnp.einsum("nl,bnld->bnd", onehot, x, precision=HI)
    mu = jnp.mean(pooled, axis=-1, keepdims=True)
    var = jnp.mean((pooled - mu) ** 2, axis=-1, keepdims=True)
    hk = (pooled - mu) * lax.rsqrt(var + LN_EPS) * params["ln_g"] + params["ln_b"]
    tf = jnp.dot(hk, params["text_proj"], precision=HI)
    tf = tf * lax.rsqrt(jnp.sum(tf * tf, axis=-1, keepdims=True) + L2_EPS)

    tf4 = tf.reshape(B, N_LEARNERS, N_CLS, EMBED_DIM)
    tfm = jnp.mean(tf4, axis=1)
    tfm = tfm * lax.rsqrt(jnp.sum(tfm * tfm, axis=-1, keepdims=True) + L2_EPS)
    return jnp.exp(params["logit_scale"][0]) * jnp.einsum("bce,be->bc", tfm, imf, precision=HI)


# ----------------------------------- main --------------------------------------
if __name__ == "__main__":
    key = jax.random.PRNGKey(0)
    k_img, k_par = jax.random.split(key)
    image = jax.random.normal(k_img, (B, C_IN, H_IN, W_IN), jnp.float32)

    params = build_params(k_par)
    toks_np, eot_np = build_tokenized_prompts()

    logits = forward_pallas(image, params, toks_np, eot_np)
    logits = jax.block_until_ready(logits)

    logits_ref = jax.block_until_ready(forward_ref(image, params, toks_np, eot_np))

    assert logits.shape == (B, N_CLS)
    np.testing.assert_allclose(np.asarray(logits), np.asarray(logits_ref), rtol=1e-2, atol=1e-2)
    print("KERNEL_OK")
</pallas_src>

<mosaic_0001>
module attributes {stable_mosaic.version = 11 : i64} {
  func.func @_fused_forward_kernel(%arg0: memref<2x768xbf16, #tpu.memory_space<vmem>>, %arg1: memref<768x32xbf16, #tpu.memory_space<vmem>>, %arg2: memref<88x128xf32, #tpu.memory_space<vmem>>, %arg3: memref<1xf32, #tpu.memory_space<smem>>, %arg4: memref<8x128xf32, #tpu.memory_space<vmem>>) attributes {dimension_semantics = [], scalar_prefetch = 0 : i64, scratch_operands = 0 : i64, tpu.core_type = #tpu.core_type<tc>} {
    %c0 = arith.constant 0 : index
    %c0_0 = arith.constant 0 : index
    %0 = vector.load %arg2[%c0, %c0_0] : memref<88x128xf32, #tpu.memory_space<vmem>>, vector<1x32xf32>
    %c1 = arith.constant 1 : index
    %c0_1 = arith.constant 0 : index
    %1 = vector.load %arg2[%c1, %c0_1] : memref<88x128xf32, #tpu.memory_space<vmem>>, vector<1x4xf32>
    %c2 = arith.constant 2 : index
    %c0_2 = arith.constant 0 : index
    %2 = vector.load %arg2[%c2, %c0_2] : memref<88x128xf32, #tpu.memory_space<vmem>>, vector<1x32xf32>
    %c3 = arith.constant 3 : index
    %c0_3 = arith.constant 0 : index
    %3 = vector.load %arg2[%c3, %c0_3] : memref<88x128xf32, #tpu.memory_space<vmem>>, vector<1x32xf32>
    %c4 = arith.constant 4 : index
    %c0_4 = arith.constant 0 : index
    %4 = vector.load %arg2[%c4, %c0_4] : memref<88x128xf32, #tpu.memory_space<vmem>>, vector<4x32xf32>
    %c8 = arith.constant 8 : index
    %c0_5 = arith.constant 0 : index
    %5 = vector.load %arg2[%c8, %c0_5] : memref<88x128xf32, #tpu.memory_space<vmem>>, vector<32x4xf32>
    %c40 = arith.constant 40 : index
    %c0_6 = arith.constant 0 : index
    %6 = vector.load %arg2[%c40, %c0_6] : memref<88x128xf32, #tpu.memory_space<vmem>>, vector<32x32xf32>
    %c72 = arith.constant 72 : index
    %c0_7 = arith.constant 0 : index
    %7 = vector.load %arg2[%c72, %c0_7] : memref<88x128xf32, #tpu.memory_space<vmem>>, vector<16x32xf32>
    %c72_8 = arith.constant 72 : index
    %c32 = arith.constant 32 : index
    %8 = vector.load %arg2[%c72_8, %c32] : memref<88x128xf32, #tpu.memory_space<vmem>>, vector<16x1xf32>
    %c0_9 = arith.constant 0 : index
    %c0_10 = arith.constant 0 : index
    %9 = vector.load %arg0[%c0_9, %c0_10] : memref<2x768xbf16, #tpu.memory_space<vmem>>, vector<2x768xbf16>
    %c0_11 = arith.constant 0 : index
    %c0_12 = arith.constant 0 : index
    %10 = vector.load %arg1[%c0_11, %c0_12] : memref<768x32xbf16, #tpu.memory_space<vmem>>, vector<768x32xbf16>
    %cst = arith.constant dense<0.000000e+00> : vector<2x32xf32>
    %11 = tpu.matmul %9, %10, %cst {dimension_numbers = #tpu.dot_dimension_numbers<[1], [0], [0], [1], [0, 0, 1, 1], [], []>} : vector<2x768xbf16>, vector<768x32xbf16>, vector<2x32xf32> -> vector<2x32xf32>
    %12 = vector.broadcast %0 : vector<1x32xf32> to vector<2x32xf32>
    %13 = arith.addf %11, %12 : vector<2x32xf32>
    %14 = arith.mulf %13, %13 : vector<2x32xf32>
    %cst_13 = arith.constant dense<0.000000e+00> : vector<2xf32>
    %15 = vector.multi_reduction <add>, %14, %cst_13 [1] : vector<2x32xf32> to vector<2xf32>
    %16 = vector.shape_cast %15 : vector<2xf32> to vector<2x1xf32>
    %cst_14 = arith.constant 9.99999996E-13 : f32
    %17 = vector.broadcast %cst_14 : f32 to vector<2x1xf32>
    %18 = arith.addf %16, %17 : vector<2x1xf32>
    %19 = math.rsqrt %18 : vector<2x1xf32>
    %20 = vector.broadcast %19 : vector<2x1xf32> to vector<2x32xf32>
    %21 = arith.mulf %13, %20 : vector<2x32xf32>
    %cst_15 = arith.constant dense<0.000000e+00> : vector<2x4xf32>
    %22 = tpu.matmul %21, %5, %cst_15 {dimension_numbers = #tpu.dot_dimension_numbers<[1], [0], [0], [1], [0, 0, 1, 1], [], []>} : vector<2x32xf32>, vector<32x4xf32>, vector<2x4xf32> -> vector<2x4xf32>
    %23 = vector.broadcast %1 : vector<1x4xf32> to vector<2x4xf32>
    %24 = arith.addf %22, %23 : vector<2x4xf32>
    %cst_16 = arith.constant 0.000000e+00 : f32
    %25 = vector.broadcast %cst_16 : f32 to vector<2x4xf32>
    %26 = arith.maximumf %24, %25 : vector<2x4xf32>
    %27 = vector.extract_strided_slice %26 {offsets = [0, 0], sizes = [1, 1], strides = [1, 1]} : vector<2x4xf32> to vector<1x1xf32>
    %28 = vector.extract_strided_slice %4 {offsets = [0, 0], sizes = [1, 32], strides = [1, 1]} : vector<4x32xf32> to vector<1x32xf32>
    %29 = vector.broadcast %27 : vector<1x1xf32> to vector<1x32xf32>
    %30 = arith.mulf %29, %28 : vector<1x32xf32>
    %31 = vector.extract_strided_slice %26 {offsets = [0, 1], sizes = [1, 1], strides = [1, 1]} : vector<2x4xf32> to vector<1x1xf32>
    %32 = vector.extract_strided_slice %4 {offsets = [1, 0], sizes = [1, 32], strides = [1, 1]} : vector<4x32xf32> to vector<1x32xf32>
    %33 = vector.broadcast %31 : vector<1x1xf32> to vector<1x32xf32>
    %34 = arith.mulf %33, %32 : vector<1x32xf32>
    %35 = arith.addf %30, %34 : vector<1x32xf32>
    %36 = vector.shape_cast %35 : vector<1x32xf32> to vector<1x32xf32>
    %37 = vector.broadcast %36 : vector<1x32xf32> to vector<4x32xf32>
    %38 = vector.extract_strided_slice %26 {offsets = [0, 2], sizes = [1, 1], strides = [1, 1]} : vector<2x4xf32> to vector<1x1xf32>
    %39 = vector.extract_strided_slice %4 {offsets = [2, 0], sizes = [1, 32], strides = [1, 1]} : vector<4x32xf32> to vector<1x32xf32>
    %40 = vector.broadcast %38 : vector<1x1xf32> to vector<1x32xf32>
    %41 = arith.mulf %40, %39 : vector<1x32xf32>
    %42 = vector.extract_strided_slice %26 {offsets = [0, 3], sizes = [1, 1], strides = [1, 1]} : vector<2x4xf32> to vector<1x1xf32>
    %43 = vector.extract_strided_slice %4 {offsets = [3, 0], sizes = [1, 32], strides = [1, 1]} : vector<4x32xf32> to vector<1x32xf32>
    %44 = vector.broadcast %42 : vector<1x1xf32> to vector<1x32xf32>
    %45 = arith.mulf %44, %43 : vector<1x32xf32>
    %46 = arith.addf %41, %45 : vector<1x32xf32>
    %47 = vector.shape_cast %46 : vector<1x32xf32> to vector<1x32xf32>
    %48 = vector.broadcast %47 : vector<1x32xf32> to vector<4x32xf32>
    %49 = vector.extract_strided_slice %26 {offsets = [1, 0], sizes = [1, 1], strides = [1, 1]} : vector<2x4xf32> to vector<1x1xf32>
    %50 = vector.extract_strided_slice %4 {offsets = [0, 0], sizes = [1, 32], strides = [1, 1]} : vector<4x32xf32> to vector<1x32xf32>
    %51 = vector.broadcast %49 : vector<1x1xf32> to vector<1x32xf32>
    %52 = arith.mulf %51, %50 : vector<1x32xf32>
    %53 = vector.extract_strided_slice %26 {offsets = [1, 1], sizes = [1, 1], strides = [1, 1]} : vector<2x4xf32> to vector<1x1xf32>
    %54 = vector.extract_strided_slice %4 {offsets = [1, 0], sizes = [1, 32], strides = [1, 1]} : vector<4x32xf32> to vector<1x32xf32>
    %55 = vector.broadcast %53 : vector<1x1xf32> to vector<1x32xf32>
    %56 = arith.mulf %55, %54 : vector<1x32xf32>
    %57 = arith.addf %52, %56 : vector<1x32xf32>
    %58 = vector.shape_cast %57 : vector<1x32xf32> to vector<1x32xf32>
    %59 = vector.broadcast %58 : vector<1x32xf32> to vector<4x32xf32>
    %60 = vector.extract_strided_slice %26 {offsets = [1, 2], sizes = [1, 1], strides = [1, 1]} : vector<2x4xf32> to vector<1x1xf32>
    %61 = vector.extract_strided_slice %4 {offsets = [2, 0], sizes = [1, 32], strides = [1, 1]} : vector<4x32xf32> to vector<1x32xf32>
    %62 = vector.broadcast %60 : vector<1x1xf32> to vector<1x32xf32>
    %63 = arith.mulf %62, %61 : vector<1x32xf32>
    %64 = vector.extract_strided_slice %26 {offsets = [1, 3], sizes = [1, 1], strides = [1, 1]} : vector<2x4xf32> to vector<1x1xf32>
    %65 = vector.extract_strided_slice %4 {offsets = [3, 0], sizes = [1, 32], strides = [1, 1]} : vector<4x32xf32> to vector<1x32xf32>
    %66 = vector.broadcast %64 : vector<1x1xf32> to vector<1x32xf32>
    %67 = arith.mulf %66, %65 : vector<1x32xf32>
    %68 = arith.addf %63, %67 : vector<1x32xf32>
    %69 = vector.shape_cast %68 : vector<1x32xf32> to vector<1x32xf32>
    %70 = vector.broadcast %69 : vector<1x32xf32> to vector<4x32xf32>
    %71 = tpu.concatenate %37, %48, %59, %70 in 0 : vector<4x32xf32>, vector<4x32xf32>, vector<4x32xf32>, vector<4x32xf32> -> vector<16x32xf32>
    %72 = vector.broadcast %8 : vector<16x1xf32> to vector<16x32xf32>
    %73 = arith.mulf %72, %71 : vector<16x32xf32>
    %74 = arith.addf %7, %73 : vector<16x32xf32>
    %cst_17 = arith.constant dense<0.000000e+00> : vector<16xf32>
    %75 = vector.multi_reduction <add>, %74, %cst_17 [1] : vector<16x32xf32> to vector<16xf32>
    %76 = vector.shape_cast %75 : vector<16xf32> to vector<16x1xf32>
    %cst_18 = arith.constant 3.200000e+01 : f32
    %77 = vector.broadcast %cst_18 : f32 to vector<16x1xf32>
    %78 = arith.divf %76, %77 : vector<16x1xf32>
    %79 = vector.broadcast %78 : vector<16x1xf32> to vector<16x32xf32>
    %80 = arith.subf %74, %79 : vector<16x32xf32>
    %81 = arith.mulf %80, %80 : vector<16x32xf32>
    %cst_19 = arith.constant dense<0.000000e+00> : vector<16xf32>
    %82 = vector.multi_reduction <add>, %81, %cst_19 [1] : vector<16x32xf32> to vector<16xf32>
    %83 = vector.shape_cast %82 : vector<16xf32> to vector<16x1xf32>
    %cst_20 = arith.constant 3.200000e+01 : f32
    %84 = vector.broadcast %cst_20 : f32 to vector<16x1xf32>
    %85 = arith.divf %83, %84 : vector<16x1xf32>
    %86 = vector.broadcast %78 : vector<16x1xf32> to vector<16x32xf32>
    %87 = arith.subf %74, %86 : vector<16x32xf32>
    %cst_21 = arith.constant 9.99999974E-6 : f32
    %88 = vector.broadcast %cst_21 : f32 to vector<16x1xf32>
    %89 = arith.addf %85, %88 : vector<16x1xf32>
    %90 = math.rsqrt %89 : vector<16x1xf32>
    %91 = vector.broadcast %90 : vector<16x1xf32> to vector<16x32xf32>
    %92 = arith.mulf %87, %91 : vector<16x32xf32>
    %93 = vector.broadcast %2 : vector<1x32xf32> to vector<16x32xf32>
    %94 = arith.mulf %92, %93 : vector<16x32xf32>
    %95 = vector.broadcast %3 : vector<1x32xf32> to vector<16x32xf32>
    %96 = arith.addf %94, %95 : vector<16x32xf32>
    %cst_22 = arith.constant dense<0.000000e+00> : vector<16x32xf32>
    %97 = tpu.matmul %96, %6, %cst_22 {dimension_numbers = #tpu.dot_dimension_numbers<[1], [0], [0], [1], [0, 0, 1, 1], [], []>} : vector<16x32xf32>, vector<32x32xf32>, vector<16x32xf32> -> vector<16x32xf32>
    %98 = arith.mulf %97, %97 : vector<16x32xf32>
    %cst_23 = arith.constant dense<0.000000e+00> : vector<16xf32>
    %99 = vector.multi_reduction <add>, %98, %cst_23 [1] : vector<16x32xf32> to vector<16xf32>
    %100 = vector.shape_cast %99 : vector<16xf32> to vector<16x1xf32>
    %cst_24 = arith.constant 9.99999996E-13 : f32
    %101 = vector.broadcast %cst_24 : f32 to vector<16x1xf32>
    %102 = arith.addf %100, %101 : vector<16x1xf32>
    %103 = math.rsqrt %102 : vector<16x1xf32>
    %104 = vector.broadcast %103 : vector<16x1xf32> to vector<16x32xf32>
    %105 = arith.mulf %97, %104 : vector<16x32xf32>
    %106 = vector.extract_strided_slice %105 {offsets = [0, 0], sizes = [4, 32], strides = [1, 1]} : vector<16x32xf32> to vector<4x32xf32>
    %107 = vector.extract_strided_slice %105 {offsets = [4, 0], sizes = [4, 32], strides = [1, 1]} : vector<16x32xf32> to vector<4x32xf32>
    %108 = arith.addf %106, %107 : vector<4x32xf32>
    %109 = vector.extract_strided_slice %105 {offsets = [8, 0], sizes = [4, 32], strides = [1, 1]} : vector<16x32xf32> to vector<4x32xf32>
    %110 = vector.extract_strided_slice %105 {offsets = [12, 0], sizes = [4, 32], strides = [1, 1]} : vector<16x32xf32> to vector<4x32xf32>
    %111 = arith.addf %109, %110 : vector<4x32xf32>
    %112 = tpu.concatenate %108, %111 in 0 : vector<4x32xf32>, vector<4x32xf32> -> vector<8x32xf32>
    %cst_25 = arith.constant 5.000000e-01 : f32
    %113 = vector.broadcast %cst_25 : f32 to vector<8x32xf32>
    %114 = arith.mulf %112, %113 : vector<8x32xf32>
    %115 = arith.mulf %114, %114 : vector<8x32xf32>
    %cst_26 = arith.constant dense<0.000000e+00> : vector<8xf32>
    %116 = vector.multi_reduction <add>, %115, %cst_26 [1] : vector<8x32xf32> to vector<8xf32>
    %117 = vector.shape_cast %116 : vector<8xf32> to vector<8x1xf32>
    %cst_27 = arith.constant 9.99999996E-13 : f32
    %118 = vector.broadcast %cst_27 : f32 to vector<8x1xf32>
    %119 = arith.addf %117, %118 : vector<8x1xf32>
    %120 = math.rsqrt %119 : vector<8x1xf32>
    %121 = vector.broadcast %120 : vector<8x1xf32> to vector<8x32xf32>
    %122 = arith.mulf %114, %121 : vector<8x32xf32>
    %c0_28 = arith.constant 0 : index
    %123 = memref.load %arg3[%c0_28] : memref<1xf32, #tpu.memory_space<smem>>
    %124 = vector.extract_strided_slice %21 {offsets = [0, 0], sizes = [1, 32], strides = [1, 1]} : vector<2x32xf32> to vector<1x32xf32>
    %125 = vector.extract_strided_slice %122 {offsets = [0, 0], sizes = [4, 32], strides = [1, 1]} : vector<8x32xf32> to vector<4x32xf32>
    %cst_29 = arith.constant dense<0.000000e+00> : vector<1x4xf32>
    %126 = tpu.matmul %124, %125, %cst_29 {dimension_numbers = #tpu.dot_dimension_numbers<[1], [1], [0], [0], [0, 0, 1, 0], [], []>} : vector<1x32xf32>, vector<4x32xf32>, vector<1x4xf32> -> vector<1x4xf32>
    %127 = vector.extract_strided_slice %21 {offsets = [1, 0], sizes = [1, 32], strides = [1, 1]} : vector<2x32xf32> to vector<1x32xf32>
    %128 = vector.extract_strided_slice %122 {offsets = [4, 0], sizes = [4, 32], strides = [1, 1]} : vector<8x32xf32> to vector<4x32xf32>
    %cst_30 = arith.constant dense<0.000000e+00> : vector<1x4xf32>
    %129 = tpu.matmul %127, %128, %cst_30 {dimension_numbers = #tpu.dot_dimension_numbers<[1], [1], [0], [0], [0, 0, 1, 0], [], []>} : vector<1x32xf32>, vector<4x32xf32>, vector<1x4xf32> -> vector<1x4xf32>
    %130 = tpu.concatenate %126, %129 in 0 : vector<1x4xf32>, vector<1x4xf32> -> vector<2x4xf32>
    %131 = vector.broadcast %123 : f32 to vector<2x4xf32>
    %132 = arith.mulf %131, %130 : vector<2x4xf32>
    %cst_31 = arith.constant 0.000000e+00 : f32
    %133 = vector.broadcast %cst_31 : f32 to vector<8x128xf32>
    %c0_32 = arith.constant 0 : index
    %c0_33 = arith.constant 0 : index
    %134 = vector.load %arg4[%c0_32, %c0_33] : memref<8x128xf32, #tpu.memory_space<vmem>>, vector<8x128xf32>
    tpu.vector_store %arg4[%c0_32, %c0_33], %133 {strides = array<i32>} : memref<8x128xf32, #tpu.memory_space<vmem>>, vector<8x128xf32>,
    %c0_34 = arith.constant 0 : index
    %c0_35 = arith.constant 0 : index
    %135 = vector.load %arg4[%c0_34, %c0_35] : memref<8x128xf32, #tpu.memory_space<vmem>>, vector<2x4xf32>
    tpu.vector_store %arg4[%c0_34, %c0_35], %132 {strides = array<i32>} : memref<8x128xf32, #tpu.memory_space<vmem>>, vector<2x4xf32>,
    return
  }
}

</mosaic_0001>

<llo_original>
// kernel: tpu_custom_call.1
$region0: #{tpu_custom_call.1}
  #allocation0 [shape = 'u32[]', space=smem, size = 0x4, offset = 0x4, fixed_abs, tag = 'smem constant byte address 0x4 - core index']
  #allocation1 [shape = 'u32[144,128]{1,0:T(1,128)}', space=vmem, size = 0x12000, scoped, tag = 'internal scratch']
  #allocation2 [shape = 'f32[1]{0:T(128)S(6)}', space=smem, size = 0x200, scoped, tag = 'scoped memory for tpu_custom_call.1']
  %s0 = inlined_call_operand.vmem [shape: bf16[2,768], index: 0, kind: input, shape index: {}]
  %s1 = inlined_call_operand.vmem [shape: bf16[768,32], index: 1, kind: input, shape index: {}]
  %s2 = inlined_call_operand.vmem [shape: f32[88,128], index: 2, kind: input, shape index: {}]
  %s3 = inlined_call_operand.<no memory space> [shape: f32[1], index: 3, kind: input, shape index: {}]
  %s4 = inlined_call_operand.hbm [shape: f32[8,128], index: 4, kind: output, shape index: {}]
  %s5 = sld [smem:[#allocation0]]
  $region26: #{tpu_custom_call.1} parent=0
    _
  %s7 = ssub.s32 1, %s5
  %s8 = scalar_select 0, %s7, %s5
  %9 = sst [smem:[#allocation2]] %s3
  $region1: #{tpu_custom_call.1} parent=0
    #allocation3 [shape = 'u8[4096]{0}', space=vmem, size = 0x1000, scoped, tag = 'output window, operand 0, single buffered']
    #allocation4 [shape = 's32[1]{0}', space=sflag, size = 0x4, scoped, tag = 'scoped memory for tpu_custom_call.1']
    %10 = vsyncpa [#allocation4], 0
    // Predicated region
    $region2: #{tpu_custom_call.1} parent=1 // pred_check
      _
    $region3: #{tpu_custom_call.1} parent=1 // pred_check_branch
      %12 = sbr.rel (0) target = $region5
    $region4: #{tpu_custom_call.1} parent=1 // pred_region
      _
    $region5: #{tpu_custom_call.1} parent=1 // pred_fallthru
      _
    // Predicated region
    $region6: #{tpu_custom_call.1} parent=1 // pred_check
      _
    $region7: #{tpu_custom_call.1} parent=1 // pred_check_branch
      %14 = sbr.rel (0) target = $region9
    $region8: #{tpu_custom_call.1} parent=1 // pred_region
      _
    $region9: #{tpu_custom_call.1} parent=1 // pred_fallthru
      _
    // Predicated region
    $region10: #{tpu_custom_call.1} parent=1 // pred_check
      _
    $region11: #{tpu_custom_call.1} parent=1 // pred_check_branch
      %16 = sbr.rel (0) target = $region13
    $region12: #{tpu_custom_call.1} parent=1 // pred_region
      _
    $region13: #{tpu_custom_call.1} parent=1 // pred_fallthru
      _
    // Predicated region
    $region14: #{tpu_custom_call.1} parent=1 // pred_check
      _
    $region15: #{tpu_custom_call.1} parent=1 // pred_check_branch
      %18 = sbr.rel (0) target = $region17
    $region16: #{tpu_custom_call.1} parent=1 // pred_region
      _
    $region17: #{tpu_custom_call.1} parent=1 // pred_fallthru
      _
    %v20 = vld [vmem:[%s2] sm:$0x1]
    %v21 = vld [vmem:[%s2 + $0x1] sm:$0x1]
    %v22 = vld [vmem:[%s2 + $0x2] sm:$0x1]
    %v23 = vld [vmem:[%s2 + $0x3] sm:$0x1]
    %v24 = vld [vmem:[%s2 + $0x4] sm:$0xf]
    %v25 = vld [vmem:[%s2 + $0x8] sm:$0xff]
    %v26 = vld [vmem:[%s2 + $0x10] sm:$0xff]
    %v27 = vld [vmem:[%s2 + $0x18] sm:$0xff]
    %v28 = vld [vmem:[%s2 + $0x20] sm:$0xff]
    %v29 = vld [vmem:[%s2 + $0x28] sm:$0xff]
    %v30 = vld [vmem:[%s2 + $0x30] sm:$0xff]
    %v31 = vld [vmem:[%s2 + $0x38] sm:$0xff]
    %v32 = vld [vmem:[%s2 + $0x40] sm:$0xff]
    %v33 = vld [vmem:[%s2 + $0x48] sm:$0xff]
    %v34 = vld [vmem:[%s2 + $0x50] sm:$0xff]
    %v35 = vld [vmem:[%s0] sm:$0x3f]
    %v36 = vld [vmem:[%s1] sm:$0xf]
    %v37 = vld [vmem:[%s1 + $0x4] sm:$0xf]
    %v38 = vld [vmem:[%s1 + $0x8] sm:$0xf]
    %v39 = vld [vmem:[%s1 + $0xc] sm:$0xf]
    %v40 = vld [vmem:[%s1 + $0x10] sm:$0xf]
    %v41 = vld [vmem:[%s1 + $0x14] sm:$0xf]
    %v42 = vld [vmem:[%s1 + $0x18] sm:$0xf]
    %v43 = vld [vmem:[%s1 + $0x1c] sm:$0xf]
    %v44 = vld [vmem:[%s1 + $0x20] sm:$0xf]
    %v45 = vld [vmem:[%s1 + $0x24] sm:$0xf]
    %v46 = vld [vmem:[%s1 + $0x28] sm:$0xf]
    %v47 = vld [vmem:[%s1 + $0x2c] sm:$0xf]
    %v48 = vld [vmem:[%s1 + $0x30] sm:$0xf]
    %v49 = vld [vmem:[%s1 + $0x34] sm:$0xf]
    %v50 = vld [vmem:[%s1 + $0x38] sm:$0xf]
    %v51 = vld [vmem:[%s1 + $0x3c] sm:$0xf]
    %v52 = vld [vmem:[%s1 + $0x40] sm:$0xf]
    %v53 = vld [vmem:[%s1 + $0x44] sm:$0xf]
    %v54 = vld [vmem:[%s1 + $0x48] sm:$0xf]
    %v55 = vld [vmem:[%s1 + $0x4c] sm:$0xf]
    %v56 = vld [vmem:[%s1 + $0x50] sm:$0xf]
    %v57 = vld [vmem:[%s1 + $0x54] sm:$0xf]
    %v58 = vld [vmem:[%s1 + $0x58] sm:$0xf]
    %v59 = vld [vmem:[%s1 + $0x5c] sm:$0xf]
    %v60 = vld [vmem:[%s1 + $0x60] sm:$0xf]
    %v61 = vld [vmem:[%s1 + $0x64] sm:$0xf]
    %v62 = vld [vmem:[%s1 + $0x68] sm:$0xf]
    %v63 = vld [vmem:[%s1 + $0x6c] sm:$0xf]
    %v64 = vld [vmem:[%s1 + $0x70] sm:$0xf]
    %v65 = vld [vmem:[%s1 + $0x74] sm:$0xf]
    %v66 = vld [vmem:[%s1 + $0x78] sm:$0xf]
    %v67 = vld [vmem:[%s1 + $0x7c] sm:$0xf]
    %v68 = vld [vmem:[%s1 + $0x80] sm:$0xf]
    %v69 = vld [vmem:[%s1 + $0x84] sm:$0xf]
    %v70 = vld [vmem:[%s1 + $0x88] sm:$0xf]
    %v71 = vld [vmem:[%s1 + $0x8c] sm:$0xf]
    %v72 = vld [vmem:[%s1 + $0x90] sm:$0xf]
    %v73 = vld [vmem:[%s1 + $0x94] sm:$0xf]
    %v74 = vld [vmem:[%s1 + $0x98] sm:$0xf]
    %v75 = vld [vmem:[%s1 + $0x9c] sm:$0xf]
    %v76 = vld [vmem:[%s1 + $0xa0] sm:$0xf]
    %v77 = vld [vmem:[%s1 + $0xa4] sm:$0xf]
    %v78 = vld [vmem:[%s1 + $0xa8] sm:$0xf]
    %v79 = vld [vmem:[%s1 + $0xac] sm:$0xf]
    %v80 = vld [vmem:[%s1 + $0xb0] sm:$0xf]
    %v81 = vld [vmem:[%s1 + $0xb4] sm:$0xf]
    %v82 = vld [vmem:[%s1 + $0xb8] sm:$0xf]
    %v83 = vld [vmem:[%s1 + $0xbc] sm:$0xf]
    %v84 = vld [vmem:[%s1 + $0xc0] sm:$0xf]
    %v85 = vld [vmem:[%s1 + $0xc4] sm:$0xf]
    %v86 = vld [vmem:[%s1 + $0xc8] sm:$0xf]
    %v87 = vld [vmem:[%s1 + $0xcc] sm:$0xf]
    %v88 = vld [vmem:[%s1 + $0xd0] sm:$0xf]
    %v89 = vld [vmem:[%s1 + $0xd4] sm:$0xf]
    %v90 = vld [vmem:[%s1 + $0xd8] sm:$0xf]
    %v91 = vld [vmem:[%s1 + $0xdc] sm:$0xf]
    %v92 = vld [vmem:[%s1 + $0xe0] sm:$0xf]
    %v93 = vld [vmem:[%s1 + $0xe4] sm:$0xf]
    %v94 = vld [vmem:[%s1 + $0xe8] sm:$0xf]
    %v95 = vld [vmem:[%s1 + $0xec] sm:$0xf]
    %v96 = vld [vmem:[%s1 + $0xf0] sm:$0xf]
    %v97 = vld [vmem:[%s1 + $0xf4] sm:$0xf]
    %v98 = vld [vmem:[%s1 + $0xf8] sm:$0xf]
    %v99 = vld [vmem:[%s1 + $0xfc] sm:$0xf]
    %v100 = vld [vmem:[%s1 + $0x100] sm:$0xf]
    %v101 = vld [vmem:[%s1 + $0x104] sm:$0xf]
    %v102 = vld [vmem:[%s1 + $0x108] sm:$0xf]
    %v103 = vld [vmem:[%s1 + $0x10c] sm:$0xf]
    %v104 = vld [vmem:[%s1 + $0x110] sm:$0xf]
    %v105 = vld [vmem:[%s1 + $0x114] sm:$0xf]
    %v106 = vld [vmem:[%s1 + $0x118] sm:$0xf]
    %v107 = vld [vmem:[%s1 + $0x11c] sm:$0xf]
    %v108 = vld [vmem:[%s1 + $0x120] sm:$0xf]
    %v109 = vld [vmem:[%s1 + $0x124] sm:$0xf]
    %v110 = vld [vmem:[%s1 + $0x128] sm:$0xf]
    %v111 = vld [vmem:[%s1 + $0x12c] sm:$0xf]
    %v112 = vld [vmem:[%s1 + $0x130] sm:$0xf]
    %v113 = vld [vmem:[%s1 + $0x134] sm:$0xf]
    %v114 = vld [vmem:[%s1 + $0x138] sm:$0xf]
    %v115 = vld [vmem:[%s1 + $0x13c] sm:$0xf]
    %v116 = vld [vmem:[%s1 + $0x140] sm:$0xf]
    %v117 = vld [vmem:[%s1 + $0x144] sm:$0xf]
    %v118 = vld [vmem:[%s1 + $0x148] sm:$0xf]
    %v119 = vld [vmem:[%s1 + $0x14c] sm:$0xf]
    %v120 = vld [vmem:[%s1 + $0x150] sm:$0xf]
    %v121 = vld [vmem:[%s1 + $0x154] sm:$0xf]
    %v122 = vld [vmem:[%s1 + $0x158] sm:$0xf]
    %v123 = vld [vmem:[%s1 + $0x15c] sm:$0xf]
    %v124 = vld [vmem:[%s1 + $0x160] sm:$0xf]
    %v125 = vld [vmem:[%s1 + $0x164] sm:$0xf]
    %v126 = vld [vmem:[%s1 + $0x168] sm:$0xf]
    %v127 = vld [vmem:[%s1 + $0x16c] sm:$0xf]
    %v128 = vld [vmem:[%s1 + $0x170] sm:$0xf]
    %v129 = vld [vmem:[%s1 + $0x174] sm:$0xf]
    %v130 = vld [vmem:[%s1 + $0x178] sm:$0xf]
    %v131 = vld [vmem:[%s1 + $0x17c] sm:$0xf]
    %v132 = vlaneseq
    %v133 = vshrl.u32 %v132, 7
    %v134 = vsub.s32 0, %v133
    %v135 = vrot.slane %v20, %v134
    %v137 = vcombine.high %v35, %v35
    %v139 = vunpack.c.l.s4 1966171168
    %v140 = vunpack.c.0.s8 %v139
    %v141 = vlaneseq
    %v142 = vshrl.u32 %v141, 7
    %v143 = vsub.s32 %v140, %v142
    %v144 = vrot.slane %v35, %v143
    %v146 = vunpack.c.l.s4 1966171168
    %v147 = vunpack.c.0.s8 %v146
    %v148 = vlaneseq
    %v149 = vshrl.u32 %v148, 7
    %v150 = vsub.s32 %v147, %v149
    %v151 = vrot.slane %v137, %v150
    %v152 = vcombine.high %v144, %v144
    %v153 = vcombine.high %v151, %v151
    %v155 = vunpack.c.l.s4 1966171168
    %v156 = vunpack.c.0.s8 %v155
    %v157 = vlaneseq
    %v158 = vshrl.u32 %v157, 7
    %v159 = vsub.s32 %v156, %v158
    %v160 = vrot.slane %v144, %v159
    %v162 = vunpack.c.l.s4 1966171168
    %v163 = vunpack.c.0.s8 %v162
    %v164 = vlaneseq
    %v165 = vshrl.u32 %v164, 7
    %v166 = vsub.s32 %v163, %v165
    %v167 = vrot.slane %v151, %v166
    %v169 = vunpack.c.l.s4 1966171168
    %v170 = vunpack.c.0.s8 %v169
    %v171 = vlaneseq
    %v172 = vshrl.u32 %v171, 7
    %v173 = vsub.s32 %v170, %v172
    %v174 = vrot.slane %v152, %v173
    %v176 = vunpack.c.l.s4 1966171168
    %v177 = vunpack.c.0.s8 %v176
    %v178 = vlaneseq
    %v179 = vshrl.u32 %v178, 7
    %v180 = vsub.s32 %v177, %v179
    %v181 = vrot.slane %v153, %v180
    %v182 = vcombine.high %v160, %v160
    %v183 = vcombine.high %v174, %v174
    %v286 = vunpack.c.l.b16 %v36
    %v287 = vunpack.c.l.b16 %v37
    %v288 = vunpack.c.l.b16 %v38
    %v289 = vunpack.c.l.b16 %v39
    %v290 = vunpack.c.l.b16 %v40
    %v291 = vunpack.c.l.b16 %v41
    %v292 = vunpack.c.l.b16 %v42
    %v293 = vunpack.c.l.b16 %v43
    %v294 = vunpack.c.l.b16 %v44
    %v295 = vunpack.c.l.b16 %v45
    %v296 = vunpack.c.l.b16 %v46
    %v297 = vunpack.c.l.b16 %v47
    %v298 = vunpack.c.l.b16 %v48
    %v299 = vunpack.c.l.b16 %v49
    %v300 = vunpack.c.l.b16 %v50
    %v301 = vunpack.c.l.b16 %v51
    %v302 = vunpack.c.l.b16 %v52
    %v303 = vunpack.c.l.b16 %v53
    %v304 = vunpack.c.l.b16 %v54
    %v305 = vunpack.c.l.b16 %v55
    %v306 = vunpack.c.l.b16 %v56
    %v307 = vunpack.c.l.b16 %v57
    %v308 = vunpack.c.l.b16 %v58
    %v309 = vunpack.c.l.b16 %v59
    %v310 = vunpack.c.l.b16 %v60
    %v311 = vunpack.c.l.b16 %v61
    %v312 = vunpack.c.l.b16 %v62
    %v313 = vunpack.c.l.b16 %v63
    %v314 = vunpack.c.l.b16 %v64
    %v315 = vunpack.c.l.b16 %v65
    %v316 = vunpack.c.l.b16 %v66
    %v317 = vunpack.c.l.b16 %v67
    %v318 = vunpack.c.l.b16 %v68
    %v319 = vunpack.c.l.b16 %v69
    %v320 = vunpack.c.l.b16 %v70
    %v321 = vunpack.c.l.b16 %v71
    %v322 = vunpack.c.l.b16 %v72
    %v323 = vunpack.c.l.b16 %v73
    %v324 = vunpack.c.l.b16 %v74
    %v325 = vunpack.c.l.b16 %v75
    %v326 = vunpack.c.l.b16 %v76
    %v327 = vunpack.c.l.b16 %v77
    %v328 = vunpack.c.l.b16 %v78
    %v329 = vunpack.c.l.b16 %v79
    %v330 = vunpack.c.l.b16 %v80
    %v331 = vunpack.c.l.b16 %v81
    %v332 = vunpack.c.l.b16 %v82
    %v333 = vunpack.c.l.b16 %v83
    %v334 = vunpack.c.l.b16 %v84
    %v335 = vunpack.c.l.b16 %v85
    %v336 = vunpack.c.l.b16 %v86
    %v337 = vunpack.c.l.b16 %v87
    %v338 = vunpack.c.l.b16 %v88
    %v339 = vunpack.c.l.b16 %v89
    %v340 = vunpack.c.l.b16 %v90
    %v341 = vunpack.c.l.b16 %v91
    %v342 = vunpack.c.l.b16 %v92
    %v343 = vunpack.c.l.b16 %v93
    %v344 = vunpack.c.l.b16 %v94
    %v345 = vunpack.c.l.b16 %v95
    %v346 = vunpack.c.l.b16 %v96
    %v347 = vunpack.c.l.b16 %v97
    %v348 = vunpack.c.l.b16 %v98
    %v349 = vunpack.c.l.b16 %v99
    %v350 = vunpack.c.l.b16 %v100
    %v351 = vunpack.c.l.b16 %v101
    %v352 = vunpack.c.l.b16 %v102
    %v353 = vunpack.c.l.b16 %v103
    %v354 = vunpack.c.l.b16 %v104
    %v355 = vunpack.c.l.b16 %v105
    %v356 = vunpack.c.l.b16 %v106
    %v357 = vunpack.c.l.b16 %v107
    %v358 = vunpack.c.l.b16 %v108
    %v359 = vunpack.c.l.b16 %v109
    %v360 = vunpack.c.l.b16 %v110
    %v361 = vunpack.c.l.b16 %v111
    %v362 = vunpack.c.l.b16 %v112
    %v363 = vunpack.c.l.b16 %v113
    %v364 = vunpack.c.l.b16 %v114
    %v365 = vunpack.c.l.b16 %v115
    %v366 = vunpack.c.l.b16 %v116
    %v367 = vunpack.c.l.b16 %v117
    %v368 = vunpack.c.l.b16 %v118
    %v369 = vunpack.c.l.b16 %v119
    %v370 = vunpack.c.l.b16 %v120
    %v371 = vunpack.c.l.b16 %v121
    %v372 = vunpack.c.l.b16 %v122
    %v373 = vunpack.c.l.b16 %v123
    %v374 = vunpack.c.l.b16 %v124
    %v375 = vunpack.c.l.b16 %v125
    %v376 = vunpack.c.l.b16 %v126
    %v377 = vunpack.c.l.b16 %v127
    %v378 = vunpack.c.l.b16 %v128
    %v379 = vunpack.c.l.b16 %v129
    %v380 = vunpack.c.l.b16 %v130
    %v381 = vunpack.c.l.b16 %v131
    %v382 = vpack.c.b16 %v287, %v286
    %v383 = vpack.c.b16 %v289, %v288
    %v384 = vpack.c.b16 %v291, %v290
    %v385 = vpack.c.b16 %v293, %v292
    %v386 = vpack.c.b16 %v295, %v294
    %v387 = vpack.c.b16 %v297, %v296
    %v388 = vpack.c.b16 %v299, %v298
    %v389 = vpack.c.b16 %v301, %v300
    %v390 = vpack.c.b16 %v303, %v302
    %v391 = vpack.c.b16 %v305, %v304
    %v392 = vpack.c.b16 %v307, %v306
    %v393 = vpack.c.b16 %v309, %v308
    %v394 = vpack.c.b16 %v311, %v310
    %v395 = vpack.c.b16 %v313, %v312
    %v396 = vpack.c.b16 %v315, %v314
    %v397 = vpack.c.b16 %v317, %v316
    %v398 = vpack.c.b16 %v319, %v318
    %v399 = vpack.c.b16 %v321, %v320
    %v400 = vpack.c.b16 %v323, %v322
    %v401 = vpack.c.b16 %v325, %v324
    %v402 = vpack.c.b16 %v327, %v326
    %v403 = vpack.c.b16 %v329, %v328
    %v404 = vpack.c.b16 %v331, %v330
    %v405 = vpack.c.b16 %v333, %v332
    %v406 = vpack.c.b16 %v335, %v334
    %v407 = vpack.c.b16 %v337, %v336
    %v408 = vpack.c.b16 %v339, %v338
    %v409 = vpack.c.b16 %v341, %v340
    %v410 = vpack.c.b16 %v343, %v342
    %v411 = vpack.c.b16 %v345, %v344
    %v412 = vpack.c.b16 %v347, %v346
    %v413 = vpack.c.b16 %v349, %v348
    %v414 = vpack.c.b16 %v351, %v350
    %v415 = vpack.c.b16 %v353, %v352
    %v416 = vpack.c.b16 %v355, %v354
    %v417 = vpack.c.b16 %v357, %v356
    %v418 = vpack.c.b16 %v359, %v358
    %v419 = vpack.c.b16 %v361, %v360
    %v420 = vpack.c.b16 %v363, %v362
    %v421 = vpack.c.b16 %v365, %v364
    %v422 = vpack.c.b16 %v367, %v366
    %v423 = vpack.c.b16 %v369, %v368
    %v424 = vpack.c.b16 %v371, %v370
    %v425 = vpack.c.b16 %v373, %v372
    %v426 = vpack.c.b16 %v375, %v374
    %v427 = vpack.c.b16 %v377, %v376
    %v428 = vpack.c.b16 %v379, %v378
    %v429 = vpack.c.b16 %v381, %v380
    %478 = vmatprep.subr.bf16.mxu0 0
    %479 = vmatpush1.bf16.msra.mxu0 %v389
    %480 = vmatprep.subr.bf16.mxu0 0
    %481 = vmatpush1.bf16.msra.mxu0 %v388
    %482 = vmatprep.subr.bf16.mxu0 0
    %483 = vmatpush1.bf16.msra.mxu0 %v387
    %484 = vmatprep.subr.bf16.mxu0 0
    %485 = vmatpush1.bf16.msra.mxu0 %v386
    %486 = vmatprep.subr.bf16.mxu0 0
    %487 = vmatpush1.bf16.msra.mxu0 %v385
    %488 = vmatprep.subr.bf16.mxu0 0
    %489 = vmatpush1.bf16.msra.mxu0 %v384
    %490 = vmatprep.subr.bf16.mxu0 0
    %491 = vmatpush1.bf16.msra.mxu0 %v383
    %492 = vmatprep.subr.bf16.mxu0 0
    %493 = vmatpush1.bf16.msra.mxu0 %v382
    %494 = vmatprep.subr.bf16.mxu0 0
    %495 = vmatpush2.bf16.msra.mxu0 %v397
    %496 = vmatprep.subr.bf16.mxu0 0
    %497 = vmatpush2.bf16.msra.mxu0 %v396
    %498 = vmatprep.subr.bf16.mxu0 0
    %499 = vmatpush2.bf16.msra.mxu0 %v395
    %500 = vmatprep.subr.bf16.mxu0 0
    %501 = vmatpush2.bf16.msra.mxu0 %v394
    %502 = vmatprep.subr.bf16.mxu0 0
    %503 = vmatpush2.bf16.msra.mxu0 %v393
    %504 = vmatprep.subr.bf16.mxu0 0
    %505 = vmatpush2.bf16.msra.mxu0 %v392
    %506 = vmatprep.subr.bf16.mxu0 0
    %507 = vmatpush2.bf16.msra.mxu0 %v391
    %508 = vmatprep.subr.bf16.mxu0 0
    %509 = vmatpush2.bf16.msra.mxu0 %v390
    %510 = vmatprep.mubr.bf16.mxu0 %v174
    %511 = vmatmul.mubr.bf16.gmra.mxu0 %v160
    %v512 = vpop.f32.mrf.mxu0
    %v513 = vadd.f32 %v135, %v512
    %v514 = vpop.f32.mrf.mxu0
    %v515 = vpop.f32.mrf.mxu0
    %v516 = vpop.f32.mrf.mxu0
    %517 = vdwg.mxu0
    %518 = vmatprep.subr.bf16.mxu0 0
    %519 = vmatpush1.bf16.msra.mxu0 %v405
    %520 = vmatprep.subr.bf16.mxu0 0
    %521 = vmatpush1.bf16.msra.mxu0 %v404
    %522 = vmatprep.subr.bf16.mxu0 0
    %523 = vmatpush1.bf16.msra.mxu0 %v403
    %524 = vmatprep.subr.bf16.mxu0 0
    %525 = vmatpush1.bf16.msra.mxu0 %v402
    %526 = vmatprep.subr.bf16.mxu0 0
    %527 = vmatpush1.bf16.msra.mxu0 %v401
    %528 = vmatprep.subr.bf16.mxu0 0
    %529 = vmatpush1.bf16.msra.mxu0 %v400
    %530 = vmatprep.subr.bf16.mxu0 0
    %531 = vmatpush1.bf16.msra.mxu0 %v399
    %532 = vmatprep.subr.bf16.mxu0 0
    %533 = vmatpush1.bf16.msra.mxu0 %v398
    %534 = vmatprep.subr.bf16.mxu0 0
    %535 = vmatpush2.bf16.msra.mxu0 %v413
    %536 = vmatprep.subr.bf16.mxu0 0
    %537 = vmatpush2.bf16.msra.mxu0 %v412
    %538 = vmatprep.subr.bf16.mxu0 0
    %539 = vmatpush2.bf16.msra.mxu0 %v411
    %540 = vmatprep.subr.bf16.mxu0 0
    %541 = vmatpush2.bf16.msra.mxu0 %v410
    %542 = vmatprep.subr.bf16.mxu0 0
    %543 = vmatpush2.bf16.msra.mxu0 %v409
    %544 = vmatprep.subr.bf16.mxu0 0
    %545 = vmatpush2.bf16.msra.mxu0 %v408
    %546 = vmatprep.subr.bf16.mxu0 0
    %547 = vmatpush2.bf16.msra.mxu0 %v407
    %548 = vmatprep.subr.bf16.mxu0 0
    %549 = vmatpush2.bf16.msra.mxu0 %v406
    %550 = vmatprep.mubr.bf16.mxu0 %v183
    %551 = vmatmul.mubr.bf16.gmra.mxu0 %v182
    %v552 = vpop.f32.mrf.mxu0
    %v553 = vadd.f32 %v513, %v552
    %v554 = vpop.f32.mrf.mxu0
    %v555 = vpop.f32.mrf.mxu0
    %v556 = vpop.f32.mrf.mxu0
    %557 = vdwg.mxu0
    %558 = vmatprep.subr.bf16.mxu0 0
    %559 = vmatpush1.bf16.msra.mxu0 %v421
    %560 = vmatprep.subr.bf16.mxu0 0
    %561 = vmatpush1.bf16.msra.mxu0 %v420
    %562 = vmatprep.subr.bf16.mxu0 0
    %563 = vmatpush1.bf16.msra.mxu0 %v419
    %564 = vmatprep.subr.bf16.mxu0 0
    %565 = vmatpush1.bf16.msra.mxu0 %v418
    %566 = vmatprep.subr.bf16.mxu0 0
    %567 = vmatpush1.bf16.msra.mxu0 %v417
    %568 = vmatprep.subr.bf16.mxu0 0
    %569 = vmatpush1.bf16.msra.mxu0 %v416
    %570 = vmatprep.subr.bf16.mxu0 0
    %571 = vmatpush1.bf16.msra.mxu0 %v415
    %572 = vmatprep.subr.bf16.mxu0 0
    %573 = vmatpush1.bf16.msra.mxu0 %v414
    %574 = vmatprep.subr.bf16.mxu0 0
    %575 = vmatpush2.bf16.msra.mxu0 %v429
    %576 = vmatprep.subr.bf16.mxu0 0
    %577 = vmatpush2.bf16.msra.mxu0 %v428
    %578 = vmatprep.subr.bf16.mxu0 0
    %579 = vmatpush2.bf16.msra.mxu0 %v427
    %580 = vmatprep.subr.bf16.mxu0 0
    %581 = vmatpush2.bf16.msra.mxu0 %v426
    %582 = vmatprep.subr.bf16.mxu0 0
    %583 = vmatpush2.bf16.msra.mxu0 %v425
    %584 = vmatprep.subr.bf16.mxu0 0
    %585 = vmatpush2.bf16.msra.mxu0 %v424
    %586 = vmatprep.subr.bf16.mxu0 0
    %587 = vmatpush2.bf16.msra.mxu0 %v423
    %588 = vmatprep.subr.bf16.mxu0 0
    %589 = vmatpush2.bf16.msra.mxu0 %v422
    %590 = vmatprep.mubr.bf16.mxu0 %v181
    %591 = vmatmul.mubr.bf16.gmra.mxu0 %v167
    %v592 = vpop.f32.mrf.mxu0
    %v593 = vadd.f32 %v553, %v592
    %v594 = vpop.f32.mrf.mxu0
    %v595 = vpop.f32.mrf.mxu0
    %v596 = vpop.f32.mrf.mxu0
    %597 = vdwg.mxu0
    %v598 = vmul.f32 %v593, %v593
    %vm599 = vcmask 254976
    %v600 = vsel %vm599, %v598, 0.0
    %601 = vadd.xlane.f32.xlu0 %v600
    %v602 = vpop.xlane.xlu0 %601
    %v603 = vadd.f32 %v602, 1e-12
    %v604 = vrsqrt.pop %v603
    %v605 = vmul.f32 %v593, %v604
    %v606 = vlaneseq
    %v607 = vshrl.u32 %v606, 7
    %v608 = vsub.s32 0, %v607
    %v609 = vrot.slane %v21, %v608
    %vm610 = vcmask 261120
    %v612 = vsel %vm610, %v605, 0
    %614 = vmatprep.subr.mxu0 0.0
    %615 = vmatpush1.msra.mxu0 0.0
    %616 = vmatprep.subr.mxu0 0.0
    %617 = vmatpush1.msra.mxu0 0.0
    %618 = vmatprep.subr.mxu0 0.0
    %619 = vmatpush1.msra.mxu0 0.0
    %620 = vmatprep.subr.mxu0 0.0
    %621 = vmatpush1.msra.mxu0 0.0
    %622 = vmatprep.subr.mxu0 0.0
    %623 = vmatpush1.msra.mxu0 0.0
    %624 = vmatprep.subr.mxu0 0.0
    %625 = vmatpush1.msra.mxu0 0.0
    %626 = vmatprep.subr.mxu0 0.0
    %627 = vmatpush1.msra.mxu0 0.0
    %628 = vmatprep.subr.mxu0 0.0
    %629 = vmatpush1.msra.mxu0 0.0
    %630 = vmatprep.subr.mxu0 0.0
    %631 = vmatpush1.msra.mxu0 0.0
    %632 = vmatprep.subr.mxu0 0.0
    %633 = vmatpush1.msra.mxu0 0.0
    %634 = vmatprep.subr.mxu0 0.0
    %635 = vmatpush1.msra.mxu0 0.0
    %636 = vmatprep.subr.mxu0 0.0
    %637 = vmatpush1.msra.mxu0 0.0
    %638 = vmatprep.subr.mxu0 0.0
    %639 = vmatpush1.msra.mxu0 %v28
    %640 = vmatprep.subr.mxu0 0.0
    %641 = vmatpush1.msra.mxu0 %v27
    %642 = vmatprep.subr.mxu0 0.0
    %643 = vmatpush1.msra.mxu0 %v26
    %644 = vmatprep.subr.mxu0 0.0
    %645 = vmatpush1.msra.mxu0 %v25
    %646 = vmatprep.subr.mxu0 0.0
    %647 = vmatpush2.msra.mxu0 0.0
    %648 = vmatprep.subr.mxu0 0.0
    %649 = vmatpush2.msra.mxu0 0.0
    %650 = vmatprep.subr.mxu0 0.0
    %651 = vmatpush2.msra.mxu0 0.0
    %652 = vmatprep.subr.mxu0 0.0
    %653 = vmatpush2.msra.mxu0 0.0
    %654 = vmatprep.subr.mxu0 0.0
    %655 = vmatpush2.msra.mxu0 0.0
    %656 = vmatprep.subr.mxu0 0.0
    %657 = vmatpush2.msra.mxu0 0.0
    %658 = vmatprep.subr.mxu0 0.0
    %659 = vmatpush2.msra.mxu0 0.0
    %660 = vmatprep.subr.mxu0 0.0
    %661 = vmatpush2.msra.mxu0 0.0
    %662 = vmatprep.subr.mxu0 0.0
    %663 = vmatpush2.msra.mxu0 0.0
    %664 = vmatprep.subr.mxu0 0.0
    %665 = vmatpush2.msra.mxu0 0.0
    %666 = vmatprep.subr.mxu0 0.0
    %667 = vmatpush2.msra.mxu0 0.0
    %668 = vmatprep.subr.mxu0 0.0
    %669 = vmatpush2.msra.mxu0 0.0
    %670 = vmatprep.subr.mxu0 0.0
    %671 = vmatpush2.msra.mxu0 0.0
    %672 = vmatprep.subr.mxu0 0.0
    %673 = vmatpush2.msra.mxu0 0.0
    %674 = vmatprep.subr.mxu0 0.0
    %675 = vmatpush2.msra.mxu0 0.0
    %676 = vmatprep.subr.mxu0 0.0
    %677 = vmatpush2.msra.mxu0 0.0
    %678 = vmatprep.mubr.f32.mxu0 0.0
    %679 = vmatmul.mubr.f32.gmra.mxu0 %v612
    %v680 = vpop.f32.mrf.mxu0
    %v681 = vadd.f32 %v609, %v680
    %v682 = vpop.f32.mrf.mxu0
    %683 = vdwg.mxu0
    %v684 = vmax.f32 %v681, 0.0
    %686 = vset.pattern.permute.xlu0 0
    %687 = vperm.xlu0 %686, %v684
    %v688 = vpop.permute.xlu0 %687
    %v690 = vmul.f32 %v688, %v24
    %691 = vset.pattern.permute.xlu0 1
    %692 = vperm.xlu0 %691, %v684
    %v693 = vpop.permute.xlu0 %692
    %v696 = vrot.slane %v24, 1
    %v698 = vmul.f32 %v693, %v696
    %v699 = vadd.f32 %v690, %v698
    %v700 = vlaneseq
    %v701 = vshrl.u32 %v700, 7
    %v702 = vsub.s32 0, %v701
    %v703 = vrot.slane %v699, %v702
    %704 = vset.pattern.permute.xlu0 2
    %705 = vperm.xlu0 %704, %v684
    %v706 = vpop.permute.xlu0 %705
    %v708 = vrot.slane %v24, 2
    %v710 = vmul.f32 %v706, %v708
    %711 = vset.pattern.permute.xlu0 3
    %712 = vperm.xlu0 %711, %v684
    %v713 = vpop.permute.xlu0 %712
    %v715 = vrot.slane %v24, 3
    %v717 = vmul.f32 %v713, %v715
    %v718 = vadd.f32 %v710, %v717
    %v719 = vlaneseq
    %v720 = vshrl.u32 %v719, 7
    %v721 = vsub.s32 0, %v720
    %v722 = vrot.slane %v718, %v721
    %v723 = vrot.slane %v24, 7
    %v725 = vmul.f32 %v688, %v723
    %v726 = vmul.f32 %v693, %v24
    %v727 = vadd.f32 %v725, %v726
    %v728 = vlaneseq
    %v729 = vshrl.u32 %v728, 7
    %v730 = vsub.s32 1, %v729
    %v731 = vrot.slane %v727, %v730
    %v732 = vmul.f32 %v706, %v696
    %v733 = vmul.f32 %v713, %v708
    %v734 = vadd.f32 %v732, %v733
    %v735 = vlaneseq
    %v736 = vshrl.u32 %v735, 7
    %v737 = vsub.s32 1, %v736
    %v738 = vrot.slane %v734, %v737
    %vm739 = vcmask 1043456
    %v740 = vsel %vm739, %v703, %v722
    %v741 = vsel %vm739, %v731, %v738
    %743 = vset.pattern.permute.xlu0 32
    %744 = vperm.xlu0 %743, %v33
    %v745 = vpop.permute.xlu0 %744
    %748 = vset.pattern.permute.xlu0 32
    %749 = vperm.xlu0 %748, %v34
    %v750 = vpop.permute.xlu0 %749
    %v752 = vmul.f32 %v745, %v740
    %v753 = vmul.f32 %v750, %v741
    %v754 = vadd.f32 %v33, %v752
    %v755 = vadd.f32 %v34, %v753
    %v756 = vsel %vm610, %v754, 0.0
    %757 = vadd.xlane.f32.xlu0 %v756
    %v758 = vpop.xlane.xlu0 %757
    %v759 = vsel %vm610, %v755, 0.0
    %760 = vadd.xlane.f32.xlu0 %v759
    %v761 = vpop.xlane.xlu0 %760
    %v762 = vrcp.pop 32.0
    %v763 = vmul.f32 %v758, %v762
    %v764 = vmul.f32 %v761, %v762
    %v765 = vsub.f32 %v754, %v763
    %v766 = vsub.f32 %v755, %v764
    %v767 = vmul.f32 %v765, %v765
    %v768 = vmul.f32 %v766, %v766
    %v769 = vsel %vm610, %v767, 0.0
    %770 = vadd.xlane.f32.xlu0 %v769
    %v771 = vpop.xlane.xlu0 %770
    %v772 = vsel %vm610, %v768, 0.0
    %773 = vadd.xlane.f32.xlu0 %v772
    %v774 = vpop.xlane.xlu0 %773
    %v775 = vmul.f32 %v771, %v762
    %v776 = vmul.f32 %v774, %v762
    %v777 = vadd.f32 %v775, 1e-05
    %v778 = vadd.f32 %v776, 1e-05
    %v779 = vrsqrt.pop %v777
    %v780 = vrsqrt.pop %v778
    %v781 = vmul.f32 %v765, %v779
    %v782 = vmul.f32 %v766, %v780
    %v783 = vlaneseq
    %v784 = vshrl.u32 %v783, 7
    %v785 = vsub.s32 0, %v784
    %v786 = vrot.slane %v22, %v785
    %v787 = vmul.f32 %v781, %v786
    %v788 = vmul.f32 %v782, %v786
    %v789 = vlaneseq
    %v790 = vshrl.u32 %v789, 7
    %v791 = vsub.s32 0, %v790
    %v792 = vrot.slane %v23, %v791
    %v793 = vadd.f32 %v787, %v792
    %v794 = vadd.f32 %v788, %v792
    %v796 = vsel %vm610, %v793, 0
    %v799 = vsel %vm610, %v794, 0
    %801 = vmatprep.subr.mxu0 0.0
    %802 = vmatpush1.msra.mxu0 0.0
    %803 = vmatprep.subr.mxu0 0.0
    %804 = vmatpush1.msra.mxu0 0.0
    %805 = vmatprep.subr.mxu0 0.0
    %806 = vmatpush1.msra.mxu0 0.0
    %807 = vmatprep.subr.mxu0 0.0
    %808 = vmatpush1.msra.mxu0 0.0
    %809 = vmatprep.subr.mxu0 0.0
    %810 = vmatpush1.msra.mxu0 0.0
    %811 = vmatprep.subr.mxu0 0.0
    %812 = vmatpush1.msra.mxu0 0.0
    %813 = vmatprep.subr.mxu0 0.0
    %814 = vmatpush1.msra.mxu0 0.0
    %815 = vmatprep.subr.mxu0 0.0
    %816 = vmatpush1.msra.mxu0 0.0
    %817 = vmatprep.subr.mxu0 0.0
    %818 = vmatpush1.msra.mxu0 0.0
    %819 = vmatprep.subr.mxu0 0.0
    %820 = vmatpush1.msra.mxu0 0.0
    %821 = vmatprep.subr.mxu0 0.0
    %822 = vmatpush1.msra.mxu0 0.0
    %823 = vmatprep.subr.mxu0 0.0
    %824 = vmatpush1.msra.mxu0 0.0
    %825 = vmatprep.subr.mxu0 0.0
    %826 = vmatpush1.msra.mxu0 %v32
    %827 = vmatprep.subr.mxu0 0.0
    %828 = vmatpush1.msra.mxu0 %v31
    %829 = vmatprep.subr.mxu0 0.0
    %830 = vmatpush1.msra.mxu0 %v30
    %831 = vmatprep.subr.mxu0 0.0
    %832 = vmatpush1.msra.mxu0 %v29
    %833 = vmatprep.subr.mxu0 0.0
    %834 = vmatpush2.msra.mxu0 0.0
    %835 = vmatprep.subr.mxu0 0.0
    %836 = vmatpush2.msra.mxu0 0.0
    %837 = vmatprep.subr.mxu0 0.0
    %838 = vmatpush2.msra.mxu0 0.0
    %839 = vmatprep.subr.mxu0 0.0
    %840 = vmatpush2.msra.mxu0 0.0
    %841 = vmatprep.subr.mxu0 0.0
    %842 = vmatpush2.msra.mxu0 0.0
    %843 = vmatprep.subr.mxu0 0.0
    %844 = vmatpush2.msra.mxu0 0.0
    %845 = vmatprep.subr.mxu0 0.0
    %846 = vmatpush2.msra.mxu0 0.0
    %847 = vmatprep.subr.mxu0 0.0
    %848 = vmatpush2.msra.mxu0 0.0
    %849 = vmatprep.subr.mxu0 0.0
    %850 = vmatpush2.msra.mxu0 0.0
    %851 = vmatprep.subr.mxu0 0.0
    %852 = vmatpush2.msra.mxu0 0.0
    %853 = vmatprep.subr.mxu0 0.0
    %854 = vmatpush2.msra.mxu0 0.0
    %855 = vmatprep.subr.mxu0 0.0
    %856 = vmatpush2.msra.mxu0 0.0
    %857 = vmatprep.subr.mxu0 0.0
    %858 = vmatpush2.msra.mxu0 0.0
    %859 = vmatprep.subr.mxu0 0.0
    %860 = vmatpush2.msra.mxu0 0.0
    %861 = vmatprep.subr.mxu0 0.0
    %862 = vmatpush2.msra.mxu0 0.0
    %863 = vmatprep.subr.mxu0 0.0
    %864 = vmatpush2.msra.mxu0 0.0
    %865 = vmatprep.mubr.f32.mxu0 0.0
    %866 = vmatmul.mubr.f32.gmra.mxu0 %v796
    %v867 = vpop.f32.mrf.mxu0
    %v868 = vadd.f32 0.0, %v867
    %v869 = vpop.f32.mrf.mxu0
    %870 = vmatprep.mubr.f32.mxu0 0.0
    %871 = vmatmul.mubr.f32.gmra.mxu0 %v799
    %v872 = vpop.f32.mrf.mxu0
    %v873 = vadd.f32 0.0, %v872
    %v874 = vpop.f32.mrf.mxu0
    %875 = vdwg.mxu0
    %v876 = vmul.f32 %v868, %v868
    %v877 = vmul.f32 %v873, %v873
    %v878 = vsel %vm610, %v876, 0.0
    %879 = vadd.xlane.f32.xlu0 %v878
    %v880 = vpop.xlane.xlu0 %879
    %v881 = vsel %vm610, %v877, 0.0
    %882 = vadd.xlane.f32.xlu0 %v881
    %v883 = vpop.xlane.xlu0 %882
    %v884 = vadd.f32 %v880, 1e-12
    %v885 = vadd.f32 %v883, 1e-12
    %v886 = vrsqrt.pop %v884
    %v887 = vrsqrt.pop %v885
    %v888 = vmul.f32 %v868, %v886
    %v889 = vmul.f32 %v873, %v887
    %v891 = vrot.slane %v888, 4
    %v893 = vadd.f32 %v888, %v891
    %v895 = vrot.slane %v889, 4
    %v897 = vadd.f32 %v889, %v895
    %v899 = vrot.slane %v897, 4
    %v901 = vsel %vm739, %v893, %v899
    %v902 = vmul.f32 %v901, 0.5
    %v903 = vmul.f32 %v902, %v902
    %v904 = vsel %vm610, %v903, 0.0
    %905 = vadd.xlane.f32.xlu0 %v904
    %v906 = vpop.xlane.xlu0 %905
    %v907 = vadd.f32 %v906, 1e-12
    %v908 = vrsqrt.pop %v907
    %v909 = vmul.f32 %v902, %v908
    %s910 = sld [smem:[#allocation2]]
    %v912 = vsel %vm610, %v909, 0
    %914 = vmatprep.subr.mxu0 0.0
    %915 = vmatpush1.xpose.msra.mxu0 0.0
    %916 = vmatprep.subr.mxu0 0.0
    %917 = vmatpush1.xpose.msra.mxu0 0.0
    %918 = vmatprep.subr.mxu0 0.0
    %919 = vmatpush1.xpose.msra.mxu0 0.0
    %920 = vmatprep.subr.mxu0 0.0
    %921 = vmatpush1.xpose.msra.mxu0 0.0
    %922 = vmatprep.subr.mxu0 0.0
    %923 = vmatpush1.xpose.msra.mxu0 0.0
    %924 = vmatprep.subr.mxu0 0.0
    %925 = vmatpush1.xpose.msra.mxu0 0.0
    %926 = vmatprep.subr.mxu0 0.0
    %927 = vmatpush1.xpose.msra.mxu0 0.0
    %928 = vmatprep.subr.mxu0 0.0
    %929 = vmatpush1.xpose.msra.mxu0 0.0
    %930 = vmatprep.subr.mxu0 0.0
    %931 = vmatpush1.xpose.msra.mxu0 0.0
    %932 = vmatprep.subr.mxu0 0.0
    %933 = vmatpush1.xpose.msra.mxu0 0.0
    %934 = vmatprep.subr.mxu0 0.0
    %935 = vmatpush1.xpose.msra.mxu0 0.0
    %936 = vmatprep.subr.mxu0 0.0
    %937 = vmatpush1.xpose.msra.mxu0 0.0
    %938 = vmatprep.subr.mxu0 0.0
    %939 = vmatpush1.xpose.msra.mxu0 0.0
    %940 = vmatprep.subr.mxu0 0.0
    %941 = vmatpush1.xpose.msra.mxu0 0.0
    %942 = vmatprep.subr.mxu0 0.0
    %943 = vmatpush1.xpose.msra.mxu0 0.0
    %944 = vmatprep.subr.mxu0 0.0
    %945 = vmatpush1.xpose.msra.mxu0 %v912
    %946 = vmatprep.subr.mxu0 0.0
    %947 = vmatpush2.xpose.msra.mxu0 0.0
    %948 = vmatprep.subr.mxu0 0.0
    %949 = vmatpush2.xpose.msra.mxu0 0.0
    %950 = vmatprep.subr.mxu0 0.0
    %951 = vmatpush2.xpose.msra.mxu0 0.0
    %952 = vmatprep.subr.mxu0 0.0
    %953 = vmatpush2.xpose.msra.mxu0 0.0
    %954 = vmatprep.subr.mxu0 0.0
    %955 = vmatpush2.xpose.msra.mxu0 0.0
    %956 = vmatprep.subr.mxu0 0.0
    %957 = vmatpush2.xpose.msra.mxu0 0.0
    %958 = vmatprep.subr.mxu0 0.0
    %959 = vmatpush2.xpose.msra.mxu0 0.0
    %960 = vmatprep.subr.mxu0 0.0
    %961 = vmatpush2.xpose.msra.mxu0 0.0
    %962 = vmatprep.subr.mxu0 0.0
    %963 = vmatpush2.xpose.msra.mxu0 0.0
    %964 = vmatprep.subr.mxu0 0.0
    %965 = vmatpush2.xpose.msra.mxu0 0.0
    %966 = vmatprep.subr.mxu0 0.0
    %967 = vmatpush2.xpose.msra.mxu0 0.0
    %968 = vmatprep.subr.mxu0 0.0
    %969 = vmatpush2.xpose.msra.mxu0 0.0
    %970 = vmatprep.subr.mxu0 0.0
    %971 = vmatpush2.xpose.msra.mxu0 0.0
    %972 = vmatprep.subr.mxu0 0.0
    %973 = vmatpush2.xpose.msra.mxu0 0.0
    %974 = vmatprep.subr.mxu0 0.0
    %975 = vmatpush2.xpose.msra.mxu0 0.0
    %976 = vmatprep.subr.mxu0 0.0
    %977 = vmatpush2.xpose.msra.mxu0 0.0
    %978 = vmatprep.mubr.f32.mxu0 0.0
    %979 = vmatmul.mubr.f32.gmra.mxu0 %v612
    %v980 = vpop.f32.mrf.mxu0
    %v981 = vadd.f32 0.0, %v980
    %v982 = vpop.f32.mrf.mxu0
    %983 = vdwg.mxu0
    %v984 = vrot.slane %v605, 1
    %v985 = vrot.slane %v909, 4
    %v986 = vsel %vm610, %v984, 0
    %v988 = vsel %vm610, %v985, 0
    %990 = vmatprep.subr.mxu0 0.0
    %991 = vmatpush1.xpose.msra.mxu0 0.0
    %992 = vmatprep.subr.mxu0 0.0
    %993 = vmatpush1.xpose.msra.mxu0 0.0
    %994 = vmatprep.subr.mxu0 0.0
    %995 = vmatpush1.xpose.msra.mxu0 0.0
    %996 = vmatprep.subr.mxu0 0.0
    %997 = vmatpush1.xpose.msra.mxu0 0.0
    %998 = vmatprep.subr.mxu0 0.0
    %999 = vmatpush1.xpose.msra.mxu0 0.0
    %1000 = vmatprep.subr.mxu0 0.0
    %1001 = vmatpush1.xpose.msra.mxu0 0.0
    %1002 = vmatprep.subr.mxu0 0.0
    %1003 = vmatpush1.xpose.msra.mxu0 0.0
    %1004 = vmatprep.subr.mxu0 0.0
    %1005 = vmatpush1.xpose.msra.mxu0 0.0
    %1006 = vmatprep.subr.mxu0 0.0
    %1007 = vmatpush1.xpose.msra.mxu0 0.0
    %1008 = vmatprep.subr.mxu0 0.0
    %1009 = vmatpush1.xpose.msra.mxu0 0.0
    %1010 = vmatprep.subr.mxu0 0.0
    %1011 = vmatpush1.xpose.msra.mxu0 0.0
    %1012 = vmatprep.subr.mxu0 0.0
    %1013 = vmatpush1.xpose.msra.mxu0 0.0
    %1014 = vmatprep.subr.mxu0 0.0
    %1015 = vmatpush1.xpose.msra.mxu0 0.0
    %1016 = vmatprep.subr.mxu0 0.0
    %1017 = vmatpush1.xpose.msra.mxu0 0.0
    %1018 = vmatprep.subr.mxu0 0.0
    %1019 = vmatpush1.xpose.msra.mxu0 0.0
    %1020 = vmatprep.subr.mxu0 0.0
    %1021 = vmatpush1.xpose.msra.mxu0 %v988
    %1022 = vmatprep.subr.mxu0 0.0
    %1023 = vmatpush2.xpose.msra.mxu0 0.0
    %1024 = vmatprep.subr.mxu0 0.0
    %1025 = vmatpush2.xpose.msra.mxu0 0.0
    %1026 = vmatprep.subr.mxu0 0.0
    %1027 = vmatpush2.xpose.msra.mxu0 0.0
    %1028 = vmatprep.subr.mxu0 0.0
    %1029 = vmatpush2.xpose.msra.mxu0 0.0
    %1030 = vmatprep.subr.mxu0 0.0
    %1031 = vmatpush2.xpose.msra.mxu0 0.0
    %1032 = vmatprep.subr.mxu0 0.0
    %1033 = vmatpush2.xpose.msra.mxu0 0.0
    %1034 = vmatprep.subr.mxu0 0.0
    %1035 = vmatpush2.xpose.msra.mxu0 0.0
    %1036 = vmatprep.subr.mxu0 0.0
    %1037 = vmatpush2.xpose.msra.mxu0 0.0
    %1038 = vmatprep.subr.mxu0 0.0
    %1039 = vmatpush2.xpose.msra.mxu0 0.0
    %1040 = vmatprep.subr.mxu0 0.0
    %1041 = vmatpush2.xpose.msra.mxu0 0.0
    %1042 = vmatprep.subr.mxu0 0.0
    %1043 = vmatpush2.xpose.msra.mxu0 0.0
    %1044 = vmatprep.subr.mxu0 0.0
    %1045 = vmatpush2.xpose.msra.mxu0 0.0
    %1046 = vmatprep.subr.mxu0 0.0
    %1047 = vmatpush2.xpose.msra.mxu0 0.0
    %1048 = vmatprep.subr.mxu0 0.0
    %1049 = vmatpush2.xpose.msra.mxu0 0.0
    %1050 = vmatprep.subr.mxu0 0.0
    %1051 = vmatpush2.xpose.msra.mxu0 0.0
    %1052 = vmatprep.subr.mxu0 0.0
    %1053 = vmatpush2.xpose.msra.mxu0 0.0
    %1054 = vmatprep.mubr.f32.mxu0 0.0
    %1055 = vmatmul.mubr.f32.gmra.mxu0 %v986
    %v1056 = vpop.f32.mrf.mxu0
    %v1057 = vadd.f32 0.0, %v1056
    %v1058 = vpop.f32.mrf.mxu0
    %1059 = vdwg.mxu0
    %v1061 = vrot.slane %v1057, 7
    %vm1063 = vcmask 1040384
    %v1064 = vsel %vm1063, %v981, %v1061
    %v1065 = vstv %s910
    %v1066 = vmul.f32 %v1065, %v1064
    %1067 = vst [vmem:[#allocation3] sm:$0xff] 0.0
    %vm1068 = vcmask 25600
    %1069 = vst.msk [vmem:[#allocation3] sm:$0x3] %vm1068, %v1066
    // Predicated region
    $region18: #{tpu_custom_call.1} parent=1 // pred_check
      _
    $region19: #{tpu_custom_call.1} parent=1 // pred_check_branch
      %1071 = sbr.rel (0) target = $region21
    $region20: #{tpu_custom_call.1} parent=1 // pred_region
      %s1073 = ssub.s32 128, 128
      %1074 = vsyncadd [#allocation4], %s1073
      %s1076 = sshll.u32 [#allocation3], 4
      %s1077 = int_to_ptr.vmem [resolvable:$true] %s1076
      %1079 = dma.vmem_to_hbm [thread:$0]  %s1077, 128, %s4, [#allocation4]
    $region21: #{tpu_custom_call.1} parent=1 // pred_fallthru
      _
    // Predicated region
    $region22: #{tpu_custom_call.1} parent=1 // pred_check
      _
    $region23: #{tpu_custom_call.1} parent=1 // pred_check_branch
      %1081 = sbr.rel (0) target = $region25
    $region24: #{tpu_custom_call.1} parent=1 // pred_region
      %1082 = dma.done [#allocation4], 128
    $region25: #{tpu_custom_call.1} parent=1 // pred_fallthru
      _
    %1083 = vsyncpa [#allocation4], 1

</llo_original>
